<compile_context>
chip_gen: v7x
topology: tpu7x:2x2x1
jax: 0.10.0
libtpu: 0.0.40
codegen_flags: <defaults>
</compile_context>

<pallas_src>
import jax
import jax.numpy as jnp
from jax.experimental import pallas as pl
from jax.experimental.pallas import tpu as pltpu


_LANES = 128


def _round_up(n, m):
    return ((n + m - 1) // m) * m


def _padded_block_bytes(rows, cols, itemsize):
    """VMEM footprint of one (rows, cols) block buffer after (8, 128) padding."""
    return _round_up(rows, 8) * _round_up(cols, _LANES) * itemsize


def _choose_tile(batch, max_tile, row_align, min_tiles=4):
    """Largest row tile <= max_tile that still yields >= min_tiles grid steps
    (when batch allows), aligned to the sublane packing granularity."""
    tb = _round_up(max(1, pl.cdiv(batch, min_tiles)), row_align)
    tb = min(tb, _round_up(max_tile, row_align), _round_up(batch, row_align))
    return max(tb, row_align)


def _mlp_kernel(x_ref, w1_ref, b1_ref, w2_ref, b2_ref, w3_ref, b3_ref, o_ref):
    """One batch tile: (TB, F) -> (TB, 1). Weights/biases are VMEM-resident."""
    x = x_ref[...]

    # fc1 + ReLU   (MXU, f32 accumulate; bias/ReLU stay f32)
    h1 = jnp.dot(x, w1_ref[...], preferred_element_type=jnp.float32) + b1_ref[...]
    h1 = jnp.maximum(h1, 0.0)

    # fc2 + ReLU   (MXU). Match h1 to the weight dtype so a bf16 weight stream
    # keeps the MXU in native bf16 (no-op when everything is f32).
    h2 = jnp.dot(h1.astype(w2_ref.dtype), w2_ref[...],
                 preferred_element_type=jnp.float32) + b2_ref[...]
    h2 = jnp.maximum(h2, 0.0)

    # fc3: (TB, 32) x (32, 1). A K=32, N=1 matmul wastes a full MXU pass, so do
    # it as a broadcast multiply + lane reduction (VPU/XLU slots have slack).
    # w3_ref is passed in as a (1, 32) row.
    w3 = w3_ref[...].astype(jnp.float32)
    logits = jnp.sum(h2 * w3, axis=-1, keepdims=True) + b3_ref[...]

    # Sigmoid: exp on the EUP, 1/(1+e) via approximate EUP reciprocal (vrcp),
    # keeping the serial divide off the VALU epilogue.
    e = jnp.exp(-logits)
    o_ref[...] = pl.reciprocal(1.0 + e, approx=True)


def phishing_classifier_forward(x, params, *, max_tile=8192, use_bf16=False):
    """x: (B, input_size). params: (in,out) weights and (1,out) biases."""
    B, F = x.shape
    w1, b1 = params["w1"], params["b1"]
    w2, b2 = params["w2"], params["b2"]
    w3, b3 = params["w3"], params["b3"]
    w3_row = w3.reshape(1, -1)  # (1, 32): lane-oriented for the in-kernel reduce

    if use_bf16:
        # Halves the dominant x HBM stream and the padded x VMEM buffers;
        # dots still accumulate in f32 (≈1e-2 deviation vs PyTorch f32).
        x = x.astype(jnp.bfloat16)
        w1 = w1.astype(jnp.bfloat16)
        w2 = w2.astype(jnp.bfloat16)
        w3_row = w3_row.astype(jnp.bfloat16)

    row_align = 16 if use_bf16 else 8  # bf16 packs 16 rows per sublane tile
    tb = _choose_tile(B, max_tile, row_align)
    grid = (pl.cdiv(B, tb),)  # ragged last tile handled by Pallas masking

    # Constant index_map: fetched once, stays resident in VMEM across the grid.
    resident = lambda arr: pl.BlockSpec(arr.shape, lambda i: (0, 0))

    hidden1, hidden2 = w1.shape[1], w2.shape[1]
    x_itemsize = jnp.dtype(x.dtype).itemsize
    cost = pl.CostEstimate(
        flops=2 * B * (F * hidden1 + hidden1 * hidden2 + hidden2),
        transcendentals=2 * B,  # exp + reciprocal per row
        bytes_accessed=B * F * x_itemsize + B * 4
        + sum(int(p.size) * jnp.dtype(p.dtype).itemsize
              for p in (w1, b1, w2, b2, w3_row, b3)),
    )

    # VMEM budget with lane padding: x and out are double-buffered blocks,
    # weights/biases are small residents, plus headroom for h1/h2 temporaries.
    est_vmem = (
        2 * _padded_block_bytes(tb, F, x_itemsize)            # x blocks
        + 2 * _padded_block_bytes(tb, 1, 4)                   # out blocks
        + 2 * sum(_padded_block_bytes(p.shape[0], p.shape[1],
                                      jnp.dtype(p.dtype).itemsize)
                  for p in (w1, b1, w2, b2, w3_row, b3))
        + 3 * _padded_block_bytes(tb, _LANES, 4)              # h1/h2/temps
    )
    vmem_limit = min(max(32 << 20, _round_up(est_vmem * 3 // 2, 1 << 20)),
                     48 << 20)  # stay under v7x's 64 MiB physical VMEM

    out = pl.pallas_call(
        _mlp_kernel,
        out_shape=jax.ShapeDtypeStruct((B, 1), jnp.float32),
        grid=grid,
        in_specs=[
            pl.BlockSpec((tb, F), lambda i: (i, 0)),  # x: batch-tiled, pipelined
            resident(w1), resident(b1),
            resident(w2), resident(b2),
            resident(w3_row), resident(b3),
        ],
        out_specs=pl.BlockSpec((tb, 1), lambda i: (i, 0)),
        compiler_params=pltpu.CompilerParams(
            dimension_semantics=("parallel",),  # v7x: shard batch tiles over 2 TCs
            vmem_limit_bytes=int(vmem_limit),
        ),
        cost_estimate=cost,
    )(x, w1, b1, w2, b2, w3_row, b3)

    return out


def init_params(key, input_size=37):
    """Deterministic PyTorch-style init: U(-1/sqrt(fan_in), 1/sqrt(fan_in))."""
    dims = [(input_size, 64), (64, 32), (32, 1)]
    params = {}
    for i, (fin, fout) in enumerate(dims, start=1):
        key, kw, kb = jax.random.split(key, 3)
        bound = 1.0 / jnp.sqrt(jnp.float32(fin))
        params[f"w{i}"] = jax.random.uniform(
            kw, (fin, fout), jnp.float32, minval=-bound, maxval=bound)
        params[f"b{i}"] = jax.random.uniform(
            kb, (1, fout), jnp.float32, minval=-bound, maxval=bound)
    return params


def _reference(x, params):
    h1 = jnp.maximum(x @ params["w1"] + params["b1"], 0.0)
    h2 = jnp.maximum(h1 @ params["w2"] + params["b2"], 0.0)
    return jax.nn.sigmoid(h2 @ params["w3"] + params["b3"])


if __name__ == "__main__":
    input_size = 37
    params = init_params(jax.random.PRNGKey(0), input_size)
    key = jax.random.PRNGKey(0)

    # Case 1: small aligned batch.
    key, kx = jax.random.split(key)
    x = jax.random.normal(kx, (8, input_size), dtype=jnp.float32)
    out = jax.block_until_ready(phishing_classifier_forward(x, params))
    ref = _reference(x, params)
    assert out.shape == (8, 1)
    # approx=True reciprocal can land marginally outside [0, 1]; allow slack.
    assert bool(jnp.all((out >= -1e-6) & (out <= 1.0 + 1e-3)))
    assert bool(jnp.allclose(out, ref, atol=2e-3, rtol=2e-3))

    # Case 2: batch exercising the ragged (masked) last tile, no pad copy.
    key, kx2 = jax.random.split(key)
    x2 = jax.random.normal(kx2, (13, input_size), dtype=jnp.float32)
    out2 = jax.block_until_ready(phishing_classifier_forward(x2, params))
    assert out2.shape == (13, 1)
    assert bool(jnp.allclose(out2, _reference(x2, params), atol=2e-3, rtol=2e-3))

    # Case 3: bf16 input/weight stream (looser tolerance vs the f32 reference).
    out3 = jax.block_until_ready(
        phishing_classifier_forward(x2, params, use_bf16=True))
    assert out3.shape == (13, 1)
    assert bool(jnp.allclose(out3, _reference(x2, params), atol=5e-2, rtol=5e-2))

    print("KERNEL_OK")
</pallas_src>

<mosaic_0001>
module attributes {stable_mosaic.version = 11 : i64} {
  func.func @_mlp_kernel(%arg0: i32, %arg1: memref<8x37xf32, #tpu.memory_space<vmem>>, %arg2: memref<37x64xf32, #tpu.memory_space<vmem>>, %arg3: memref<1x64xf32, #tpu.memory_space<vmem>>, %arg4: memref<64x32xf32, #tpu.memory_space<vmem>>, %arg5: memref<1x32xf32, #tpu.memory_space<vmem>>, %arg6: memref<1x32xf32, #tpu.memory_space<vmem>>, %arg7: memref<1x1xf32, #tpu.memory_space<vmem>>, %arg8: memref<8x1xf32, #tpu.memory_space<vmem>>) attributes {dimension_semantics = [#tpu.dimension_semantics<parallel>], iteration_bounds = array<i64: 1>, scalar_prefetch = 0 : i64, scratch_operands = 0 : i64, tpu.core_type = #tpu.core_type<tc>, window_params = [{transform_indices = @transform_0, window_bounds = array<i64: 8, 37>}, {pipeline_mode = #tpu.pipeline_mode<synchronous>, transform_indices = @transform_1, window_bounds = array<i64: 37, 64>}, {pipeline_mode = #tpu.pipeline_mode<synchronous>, transform_indices = @transform_2, window_bounds = array<i64: 1, 64>}, {pipeline_mode = #tpu.pipeline_mode<synchronous>, transform_indices = @transform_3, window_bounds = array<i64: 64, 32>}, {pipeline_mode = #tpu.pipeline_mode<synchronous>, transform_indices = @transform_4, window_bounds = array<i64: 1, 32>}, {pipeline_mode = #tpu.pipeline_mode<synchronous>, transform_indices = @transform_5, window_bounds = array<i64: 1, 32>}, {pipeline_mode = #tpu.pipeline_mode<synchronous>, transform_indices = @transform_6, window_bounds = array<i64: 1, 1>}, {transform_indices = @transform_7, window_bounds = array<i64: 8, 1>}]} {
    %c0 = arith.constant 0 : index
    %c0_0 = arith.constant 0 : index
    %0 = vector.load %arg1[%c0, %c0_0] : memref<8x37xf32, #tpu.memory_space<vmem>>, vector<8x37xf32>
    %c0_1 = arith.constant 0 : index
    %c0_2 = arith.constant 0 : index
    %1 = vector.load %arg2[%c0_1, %c0_2] : memref<37x64xf32, #tpu.memory_space<vmem>>, vector<37x64xf32>
    %cst = arith.constant dense<0.000000e+00> : vector<8x64xf32>
    %2 = tpu.matmul %0, %1, %cst {dimension_numbers = #tpu.dot_dimension_numbers<[1], [0], [0], [1], [0, 0, 1, 1], [], []>} : vector<8x37xf32>, vector<37x64xf32>, vector<8x64xf32> -> vector<8x64xf32>
    %c0_3 = arith.constant 0 : index
    %c0_4 = arith.constant 0 : index
    %3 = vector.load %arg3[%c0_3, %c0_4] : memref<1x64xf32, #tpu.memory_space<vmem>>, vector<1x64xf32>
    %4 = vector.broadcast %3 : vector<1x64xf32> to vector<8x64xf32>
    %5 = arith.addf %2, %4 : vector<8x64xf32>
    %cst_5 = arith.constant 0.000000e+00 : f32
    %6 = vector.broadcast %cst_5 : f32 to vector<8x64xf32>
    %7 = arith.maximumf %5, %6 : vector<8x64xf32>
    %c0_6 = arith.constant 0 : index
    %c0_7 = arith.constant 0 : index
    %8 = vector.load %arg4[%c0_6, %c0_7] : memref<64x32xf32, #tpu.memory_space<vmem>>, vector<64x32xf32>
    %cst_8 = arith.constant dense<0.000000e+00> : vector<8x32xf32>
    %9 = tpu.matmul %7, %8, %cst_8 {dimension_numbers = #tpu.dot_dimension_numbers<[1], [0], [0], [1], [0, 0, 1, 1], [], []>} : vector<8x64xf32>, vector<64x32xf32>, vector<8x32xf32> -> vector<8x32xf32>
    %c0_9 = arith.constant 0 : index
    %c0_10 = arith.constant 0 : index
    %10 = vector.load %arg5[%c0_9, %c0_10] : memref<1x32xf32, #tpu.memory_space<vmem>>, vector<1x32xf32>
    %11 = vector.broadcast %10 : vector<1x32xf32> to vector<8x32xf32>
    %12 = arith.addf %9, %11 : vector<8x32xf32>
    %cst_11 = arith.constant 0.000000e+00 : f32
    %13 = vector.broadcast %cst_11 : f32 to vector<8x32xf32>
    %14 = arith.maximumf %12, %13 : vector<8x32xf32>
    %c0_12 = arith.constant 0 : index
    %c0_13 = arith.constant 0 : index
    %15 = vector.load %arg6[%c0_12, %c0_13] : memref<1x32xf32, #tpu.memory_space<vmem>>, vector<1x32xf32>
    %16 = vector.broadcast %15 : vector<1x32xf32> to vector<8x32xf32>
    %17 = arith.mulf %14, %16 : vector<8x32xf32>
    %cst_14 = arith.constant dense<0.000000e+00> : vector<8xf32>
    %18 = vector.multi_reduction <add>, %17, %cst_14 [1] : vector<8x32xf32> to vector<8xf32>
    %19 = vector.shape_cast %18 : vector<8xf32> to vector<8x1xf32>
    %c0_15 = arith.constant 0 : index
    %c0_16 = arith.constant 0 : index
    %20 = vector.load %arg7[%c0_15, %c0_16] : memref<1x1xf32, #tpu.memory_space<vmem>>, vector<1x1xf32>
    %21 = vector.broadcast %20 : vector<1x1xf32> to vector<8x1xf32>
    %22 = arith.addf %19, %21 : vector<8x1xf32>
    %cst_17 = arith.constant 0.000000e+00 : f32
    %23 = vector.broadcast %cst_17 : f32 to vector<8x1xf32>
    %24 = arith.subf %23, %22 : vector<8x1xf32>
    %25 = math.exp %24 : vector<8x1xf32>
    %cst_18 = arith.constant 1.000000e+00 : f32
    %26 = vector.broadcast %cst_18 : f32 to vector<8x1xf32>
    %27 = arith.addf %26, %25 : vector<8x1xf32>
    %28 = tpu.reciprocal %27 {approx = true} : vector<8x1xf32> -> vector<8x1xf32>
    %c0_19 = arith.constant 0 : index
    %c0_20 = arith.constant 0 : index
    %29 = vector.load %arg8[%c0_19, %c0_20] : memref<8x1xf32, #tpu.memory_space<vmem>>, vector<8x1xf32>
    tpu.vector_store %arg8[%c0_19, %c0_20], %28 {strides = array<i32>} : memref<8x1xf32, #tpu.memory_space<vmem>>, vector<8x1xf32>,
    return
  }
  func.func @transform_0(%arg0: i32) -> (i32, i32) {
    %c0_i32 = arith.constant 0 : i32
    %c0_i32_0 = arith.constant 0 : i32
    return %arg0, %c0_i32 : i32, i32
  }
  func.func @transform_1(%arg0: i32) -> (i32, i32) {
    %c0_i32 = arith.constant 0 : i32
    %c0_i32_0 = arith.constant 0 : i32
    %c0_i32_1 = arith.constant 0 : i32
    return %c0_i32, %c0_i32_0 : i32, i32
  }
  func.func @transform_2(%arg0: i32) -> (i32, i32) {
    %c0_i32 = arith.constant 0 : i32
    %c0_i32_0 = arith.constant 0 : i32
    %c0_i32_1 = arith.constant 0 : i32
    return %c0_i32, %c0_i32_0 : i32, i32
  }
  func.func @transform_3(%arg0: i32) -> (i32, i32) {
    %c0_i32 = arith.constant 0 : i32
    %c0_i32_0 = arith.constant 0 : i32
    %c0_i32_1 = arith.constant 0 : i32
    return %c0_i32, %c0_i32_0 : i32, i32
  }
  func.func @transform_4(%arg0: i32) -> (i32, i32) {
    %c0_i32 = arith.constant 0 : i32
    %c0_i32_0 = arith.constant 0 : i32
    %c0_i32_1 = arith.constant 0 : i32
    return %c0_i32, %c0_i32_0 : i32, i32
  }
  func.func @transform_5(%arg0: i32) -> (i32, i32) {
    %c0_i32 = arith.constant 0 : i32
    %c0_i32_0 = arith.constant 0 : i32
    %c0_i32_1 = arith.constant 0 : i32
    return %c0_i32, %c0_i32_0 : i32, i32
  }
  func.func @transform_6(%arg0: i32) -> (i32, i32) {
    %c0_i32 = arith.constant 0 : i32
    %c0_i32_0 = arith.constant 0 : i32
    %c0_i32_1 = arith.constant 0 : i32
    return %c0_i32, %c0_i32_0 : i32, i32
  }
  func.func @transform_7(%arg0: i32) -> (i32, i32) {
    %c0_i32 = arith.constant 0 : i32
    %c0_i32_0 = arith.constant 0 : i32
    return %arg0, %c0_i32 : i32, i32
  }
}

</mosaic_0001>

<llo_original>
// kernel: tpu_custom_call.1
$region0: #{tpu_custom_call.1}
  #allocation0 [shape = 'u32[]', space=smem, size = 0x4, offset = 0x4, fixed_abs, tag = 'smem constant byte address 0x4 - core index']
  #allocation1 [shape = 'u32[144,128]{1,0:T(1,128)}', space=vmem, size = 0x12000, scoped, tag = 'internal scratch']
  #allocation2 [shape = 'f32[1,1]{1,0:T(1,128)S(1)}', space=vmem, size = 0x200, scoped, tag = 'scoped memory for tpu_custom_call.1']
  %s0 = inlined_call_operand.vmem [shape: f32[8,37], index: 0, kind: input, shape index: {}]
  %s1 = inlined_call_operand.vmem [shape: f32[37,64], index: 1, kind: input, shape index: {}]
  %s2 = inlined_call_operand.vmem [shape: f32[1,64], index: 2, kind: input, shape index: {}]
  %s3 = inlined_call_operand.vmem [shape: f32[64,32], index: 3, kind: input, shape index: {}]
  %s4 = inlined_call_operand.vmem [shape: f32[1,32], index: 4, kind: input, shape index: {}]
  %s5 = inlined_call_operand.vmem [shape: f32[1,32], index: 5, kind: input, shape index: {}]
  %s6 = inlined_call_operand.<no memory space> [shape: f32[1,1], index: 6, kind: input, shape index: {}]
  %s7 = inlined_call_operand.vmem [shape: f32[8,1], index: 7, kind: output, shape index: {}]
  %s8 = sld [smem:[#allocation0]]
  $region38: #{tpu_custom_call.1} parent=0
    _
  %s10 = ssub.s32 1, %s8
  %s11 = scalar_select 0, %s10, %s8
  %v12 = vstv %s6
  %13 = vst [vmem:[#allocation2] sm:$0x1] %v12
  // Predicated region
  $region2: #{tpu_custom_call.1} parent=0 // pred_check
    _
  $region3: #{tpu_custom_call.1} parent=0 // pred_check_branch
    %15 = sbr.rel (0) target = $region5
  $region4: #{tpu_custom_call.1} parent=0 // pred_region
    _
  $region5: #{tpu_custom_call.1} parent=0 // pred_fallthru
    _
  // Predicated region
  $region6: #{tpu_custom_call.1} parent=0 // pred_check
    _
  $region7: #{tpu_custom_call.1} parent=0 // pred_check_branch
    %17 = sbr.rel (0) target = $region9
  $region8: #{tpu_custom_call.1} parent=0 // pred_region
    _
  $region9: #{tpu_custom_call.1} parent=0 // pred_fallthru
    _
  // Predicated region
  $region10: #{tpu_custom_call.1} parent=0 // pred_check
    _
  $region11: #{tpu_custom_call.1} parent=0 // pred_check_branch
    %19 = sbr.rel (0) target = $region13
  $region12: #{tpu_custom_call.1} parent=0 // pred_region
    _
  $region13: #{tpu_custom_call.1} parent=0 // pred_fallthru
    _
  // Predicated region
  $region14: #{tpu_custom_call.1} parent=0 // pred_check
    _
  $region15: #{tpu_custom_call.1} parent=0 // pred_check_branch
    %21 = sbr.rel (0) target = $region17
  $region16: #{tpu_custom_call.1} parent=0 // pred_region
    _
  $region17: #{tpu_custom_call.1} parent=0 // pred_fallthru
    _
  // Predicated region
  $region18: #{tpu_custom_call.1} parent=0 // pred_check
    _
  $region19: #{tpu_custom_call.1} parent=0 // pred_check_branch
    %23 = sbr.rel (0) target = $region21
  $region20: #{tpu_custom_call.1} parent=0 // pred_region
    _
  $region21: #{tpu_custom_call.1} parent=0 // pred_fallthru
    _
  // Predicated region
  $region22: #{tpu_custom_call.1} parent=0 // pred_check
    _
  $region23: #{tpu_custom_call.1} parent=0 // pred_check_branch
    %25 = sbr.rel (0) target = $region25
  $region24: #{tpu_custom_call.1} parent=0 // pred_region
    _
  $region25: #{tpu_custom_call.1} parent=0 // pred_fallthru
    _
  // Predicated region
  $region26: #{tpu_custom_call.1} parent=0 // pred_check
    _
  $region27: #{tpu_custom_call.1} parent=0 // pred_check_branch
    %27 = sbr.rel (0) target = $region29
  $region28: #{tpu_custom_call.1} parent=0 // pred_region
    _
  $region29: #{tpu_custom_call.1} parent=0 // pred_fallthru
    _
  %v28 = vld [vmem:[%s0] sm:$0xff]
  %v29 = vld [vmem:[%s1] sm:$0xff]
  %v30 = vld [vmem:[%s1 + $0x8] sm:$0xff]
  %v31 = vld [vmem:[%s1 + $0x10] sm:$0xff]
  %v32 = vld [vmem:[%s1 + $0x18] sm:$0xff]
  %v33 = vld [vmem:[%s1 + $0x20] sm:$0x1f]
  %v34 = vld [vmem:[%s2] sm:$0x1]
  %v36 = vlaneseq
  %v37 = vshrl.u32 %v36, 7
  %v38 = vsub.s32 0, %v37
  %v39 = vrot.slane %v34, %v38
  %vm41 = vcmask 302080
  %v43 = vsel %vm41, %v28, 0
  %vm45 = vcmask 1044480
  %v47 = vsel %vm45, %v33, 0
  %49 = vmatprep.subr.mxu0 0.0
  %50 = vmatpush1.msra.mxu0 %v29
  %51 = vmatprep.subr.mxu0 0.0
  %52 = vmatpush1.msra.mxu0 %v30
  %53 = vmatprep.subr.mxu0 0.0
  %54 = vmatpush1.msra.mxu0 %v31
  %55 = vmatprep.subr.mxu0 0.0
  %56 = vmatpush1.msra.mxu0 %v32
  %57 = vmatprep.subr.mxu0 0.0
  %58 = vmatpush1.msra.mxu0 %v47
  %59 = vmatprep.subr.mxu0 0.0
  %60 = vmatpush1.msra.mxu0 0.0
  %61 = vmatprep.subr.mxu0 0.0
  %62 = vmatpush1.msra.mxu0 0.0
  %63 = vmatprep.subr.mxu0 0.0
  %64 = vmatpush1.msra.mxu0 0.0
  %65 = vmatprep.subr.mxu0 0.0
  %66 = vmatpush1.msra.mxu0 0.0
  %67 = vmatprep.subr.mxu0 0.0
  %68 = vmatpush1.msra.mxu0 0.0
  %69 = vmatprep.subr.mxu0 0.0
  %70 = vmatpush1.msra.mxu0 0.0
  %71 = vmatprep.subr.mxu0 0.0
  %72 = vmatpush1.msra.mxu0 0.0
  %73 = vmatprep.subr.mxu0 0.0
  %74 = vmatpush1.msra.mxu0 0.0
  %75 = vmatprep.subr.mxu0 0.0
  %76 = vmatpush1.msra.mxu0 0.0
  %77 = vmatprep.subr.mxu0 0.0
  %78 = vmatpush1.msra.mxu0 0.0
  %79 = vmatprep.subr.mxu0 0.0
  %80 = vmatpush1.msra.mxu0 0.0
  %81 = vmatprep.subr.mxu0 0.0
  %82 = vmatpush1.msra.mxu0 0.0
  %83 = vmatprep.subr.mxu0 0.0
  %84 = vmatpush1.msra.mxu0 0.0
  %85 = vmatprep.subr.mxu0 0.0
  %86 = vmatpush1.msra.mxu0 0.0
  %87 = vmatprep.subr.mxu0 0.0
  %88 = vmatpush1.msra.mxu0 0.0
  %89 = vmatprep.subr.mxu0 0.0
  %90 = vmatpush1.msra.mxu0 0.0
  %91 = vmatprep.subr.mxu0 0.0
  %92 = vmatpush1.msra.mxu0 0.0
  %93 = vmatprep.subr.mxu0 0.0
  %94 = vmatpush1.msra.mxu0 0.0
  %95 = vmatprep.subr.mxu0 0.0
  %96 = vmatpush1.msra.mxu0 0.0
  %97 = vmatprep.subr.mxu0 0.0
  %98 = vmatpush1.msra.mxu0 0.0
  %99 = vmatprep.subr.mxu0 0.0
  %100 = vmatpush1.msra.mxu0 0.0
  %101 = vmatprep.subr.mxu0 0.0
  %102 = vmatpush1.msra.mxu0 0.0
  %103 = vmatprep.subr.mxu0 0.0
  %104 = vmatpush1.msra.mxu0 0.0
  %105 = vmatprep.subr.mxu0 0.0
  %106 = vmatpush1.msra.mxu0 0.0
  %107 = vmatprep.subr.mxu0 0.0
  %108 = vmatpush1.msra.mxu0 0.0
  %109 = vmatprep.subr.mxu0 0.0
  %110 = vmatpush1.msra.mxu0 0.0
  %111 = vmatprep.subr.mxu0 0.0
  %112 = vmatpush1.msra.mxu0 0.0
  %113 = vmatprep.mubr.f32.mxu0 0.0
  %114 = vmatmul.mubr.f32.gmra.mrb[0].mxu0 %v43
  %v115 = vpop.f32.mrb[0].mxu0
  %v116 = vadd.f32 %v39, %v115
  %v117 = vpop.f32.mrb[0].mxu0
  %118 = vdwg.mxu0
  %v119 = vmax.f32 %v116, 0.0
  %v120 = vld [vmem:[%s3] sm:$0xff]
  %v121 = vld [vmem:[%s3 + $0x8] sm:$0xff]
  %v122 = vld [vmem:[%s3 + $0x10] sm:$0xff]
  %v123 = vld [vmem:[%s3 + $0x18] sm:$0xff]
  %v124 = vld [vmem:[%s3 + $0x20] sm:$0xff]
  %v125 = vld [vmem:[%s3 + $0x28] sm:$0xff]
  %v126 = vld [vmem:[%s3 + $0x30] sm:$0xff]
  %v127 = vld [vmem:[%s3 + $0x38] sm:$0xff]
  %v128 = vld [vmem:[%s4] sm:$0x1]
  %v130 = vlaneseq
  %v131 = vshrl.u32 %v130, 7
  %v132 = vsub.s32 0, %v131
  %v133 = vrot.slane %v128, %v132
  %vm135 = vcmask 523264
  %v137 = vsel %vm135, %v119, 0
  %139 = vmatprep.subr.mxu0 0.0
  %140 = vmatpush1.msra.mxu0 %v120
  %141 = vmatprep.subr.mxu0 0.0
  %142 = vmatpush1.msra.mxu0 %v121
  %143 = vmatprep.subr.mxu0 0.0
  %144 = vmatpush1.msra.mxu0 %v122
  %145 = vmatprep.subr.mxu0 0.0
  %146 = vmatpush1.msra.mxu0 %v123
  %147 = vmatprep.subr.mxu0 0.0
  %148 = vmatpush1.msra.mxu0 %v124
  %149 = vmatprep.subr.mxu0 0.0
  %150 = vmatpush1.msra.mxu0 %v125
  %151 = vmatprep.subr.mxu0 0.0
  %152 = vmatpush1.msra.mxu0 %v126
  %153 = vmatprep.subr.mxu0 0.0
  %154 = vmatpush1.msra.mxu0 %v127
  %155 = vmatprep.subr.mxu0 0.0
  %156 = vmatpush1.msra.mxu0 0.0
  %157 = vmatprep.subr.mxu0 0.0
  %158 = vmatpush1.msra.mxu0 0.0
  %159 = vmatprep.subr.mxu0 0.0
  %160 = vmatpush1.msra.mxu0 0.0
  %161 = vmatprep.subr.mxu0 0.0
  %162 = vmatpush1.msra.mxu0 0.0
  %163 = vmatprep.subr.mxu0 0.0
  %164 = vmatpush1.msra.mxu0 0.0
  %165 = vmatprep.subr.mxu0 0.0
  %166 = vmatpush1.msra.mxu0 0.0
  %167 = vmatprep.subr.mxu0 0.0
  %168 = vmatpush1.msra.mxu0 0.0
  %169 = vmatprep.subr.mxu0 0.0
  %170 = vmatpush1.msra.mxu0 0.0
  %171 = vmatprep.subr.mxu0 0.0
  %172 = vmatpush1.msra.mxu0 0.0
  %173 = vmatprep.subr.mxu0 0.0
  %174 = vmatpush1.msra.mxu0 0.0
  %175 = vmatprep.subr.mxu0 0.0
  %176 = vmatpush1.msra.mxu0 0.0
  %177 = vmatprep.subr.mxu0 0.0
  %178 = vmatpush1.msra.mxu0 0.0
  %179 = vmatprep.subr.mxu0 0.0
  %180 = vmatpush1.msra.mxu0 0.0
  %181 = vmatprep.subr.mxu0 0.0
  %182 = vmatpush1.msra.mxu0 0.0
  %183 = vmatprep.subr.mxu0 0.0
  %184 = vmatpush1.msra.mxu0 0.0
  %185 = vmatprep.subr.mxu0 0.0
  %186 = vmatpush1.msra.mxu0 0.0
  %187 = vmatprep.subr.mxu0 0.0
  %188 = vmatpush1.msra.mxu0 0.0
  %189 = vmatprep.subr.mxu0 0.0
  %190 = vmatpush1.msra.mxu0 0.0
  %191 = vmatprep.subr.mxu0 0.0
  %192 = vmatpush1.msra.mxu0 0.0
  %193 = vmatprep.subr.mxu0 0.0
  %194 = vmatpush1.msra.mxu0 0.0
  %195 = vmatprep.subr.mxu0 0.0
  %196 = vmatpush1.msra.mxu0 0.0
  %197 = vmatprep.subr.mxu0 0.0
  %198 = vmatpush1.msra.mxu0 0.0
  %199 = vmatprep.subr.mxu0 0.0
  %200 = vmatpush1.msra.mxu0 0.0
  %201 = vmatprep.subr.mxu0 0.0
  %202 = vmatpush1.msra.mxu0 0.0
  %203 = vmatprep.mubr.f32.mxu0 0.0
  %204 = vmatmul.mubr.f32.gmra.mrb[0].mxu0 %v137
  %v205 = vpop.f32.mrb[0].mxu0
  %v206 = vadd.f32 %v133, %v205
  %v207 = vpop.f32.mrb[0].mxu0
  %208 = vdwg.mxu0
  %v209 = vmax.f32 %v206, 0.0
  %v210 = vld [vmem:[%s5] sm:$0x1]
  %v212 = vlaneseq
  %v213 = vshrl.u32 %v212, 7
  %v214 = vsub.s32 0, %v213
  %v215 = vrot.slane %v210, %v214
  %v217 = vmul.f32 %v209, %v215
  %vm218 = vcmask 261120
  %v219 = vsel %vm218, %v217, 0.0
  %220 = vadd.xlane.f32.xlu0 %v219
  %v221 = vpop.xlane.xlu0 %220
  %v222 = vld [vmem:[#allocation2] sm:$0x1]
  %v224 = vlaneseq
  %v225 = vshrl.u32 %v224, 7
  %v226 = vsub.s32 0, %v225
  %v227 = vrot.slane %v222, %v226
  %v229 = vadd.f32 %v221, %v227
  %v230 = vsub.f32 0.0, %v229
  %v231 = vmul.f32 %v230, 1.442695
  %v232 = vpow.pop %v231
  %v233 = vadd.f32 %v232, 1.0
  %v234 = vrcp.pop %v233
  %vm235 = vcmask 7168
  %236 = vst.msk [vmem:[%s7] sm:$0xff] %vm235, %v234
  // Predicated region
  $region30: #{tpu_custom_call.1} parent=0 // pred_check
    _
  $region31: #{tpu_custom_call.1} parent=0 // pred_check_branch
    %238 = sbr.rel (0) target = $region33
  $region32: #{tpu_custom_call.1} parent=0 // pred_region
    _
  $region33: #{tpu_custom_call.1} parent=0 // pred_fallthru
    _
  // Predicated region
  $region34: #{tpu_custom_call.1} parent=0 // pred_check
    _
  $region35: #{tpu_custom_call.1} parent=0 // pred_check_branch
    %240 = sbr.rel (0) target = $region37
  $region36: #{tpu_custom_call.1} parent=0 // pred_region
    _
  $region37: #{tpu_custom_call.1} parent=0 // pred_fallthru
    _

</llo_original>
